<compile_context>
chip_gen: v7x
topology: tpu7x:2x2x1
jax: 0.10.0
libtpu: 0.0.40
codegen_flags: <defaults>
</compile_context>

<pallas_src>
import functools

import numpy as np
import jax
import jax.numpy as jnp
from jax import lax
from jax.experimental import pallas as pl
from jax.experimental.pallas import tpu as pltpu


# ----------------------------------------------------------------------------
# Host-side buffer construction (dense re-implementation of the scipy.sparse
# preprocessing in __init__; glue, not the kernel hot path).
# ----------------------------------------------------------------------------
def calc_A_hat(adj: np.ndarray) -> np.ndarray:
    n = adj.shape[0]
    A = adj + np.eye(n)
    d = A.sum(axis=1)
    d_inv_sqrt = 1.0 / np.sqrt(d)
    return d_inv_sqrt[:, None] * A * d_inv_sqrt[None, :]


def build_a_hat_buffer(adj: np.ndarray, alpha: float) -> np.ndarray:
    """The module's registered buffer: (1 - alpha) * calc_A_hat(adj)."""
    return ((1.0 - alpha) * calc_A_hat(adj)).astype(np.float32)


def _round_up(x: int, m: int) -> int:
    return ((x + m - 1) // m) * m


def _pad2(x: jnp.ndarray, rows: int, cols: int) -> jnp.ndarray:
    return jnp.pad(x, ((0, rows - x.shape[0]), (0, cols - x.shape[1])))


# Conservative VMEM budget for the fully-resident fused kernel: safe on v7x
# (64 MiB physical / 32 MiB default scoped VMEM); v5e/v6e have 128 MiB physical.
_RESIDENT_BUDGET_BYTES = 28 * 1024 * 1024
_RESIDENT_VMEM_LIMIT = 48 * 1024 * 1024
_STREAM_VMEM_LIMIT = 32 * 1024 * 1024


# ----------------------------------------------------------------------------
# Primary kernel: all niter iterations + final row gather fused, A_hat resident.
# ----------------------------------------------------------------------------
def _fused_ppr_kernel(a_ref, lp_ref, idx_ref, out_ref, preds_ref, *,
                      alpha, niter, n_idx):
    # preds <- local_preds
    preds_ref[...] = lp_ref[...]

    def step(_, carry):
        p = preds_ref[...]                                   # f32 (N_pad, F_pad)
        preds_ref[...] = (
            jnp.dot(a_ref[...], p.astype(a_ref.dtype),       # bf16 (or f32) MXU matmul
                    preferred_element_type=jnp.float32)      # f32 accumulation
            + alpha * lp_ref[...])                           # f32 epilogue
        return carry

    lax.fori_loop(0, niter, step, 0)

    # Fused preds[idx] gather: only B rows leave VMEM.
    def gather(b, carry):
        out_ref[pl.ds(b, 1), :] = preds_ref[pl.ds(idx_ref[b], 1), :]
        return carry

    lax.fori_loop(0, n_idx, gather, 0)


def _resident_forward(a_hat, local_preds, idx_i32, *, alpha, niter, a_dtype):
    N, F = local_preds.shape
    B = idx_i32.shape[0]
    f_pad = _round_up(max(F, 1), 128)          # lane-dense output / MXU columns
    n_pad = _round_up(N, 128)

    a = _pad2(a_hat.astype(a_dtype), n_pad, n_pad)
    lp = _pad2(local_preds.astype(jnp.float32), n_pad, f_pad)

    kernel = functools.partial(_fused_ppr_kernel, alpha=float(alpha),
                               niter=int(niter), n_idx=int(B))
    out = pl.pallas_call(
        kernel,
        out_shape=jax.ShapeDtypeStruct((B, f_pad), jnp.float32),
        in_specs=[
            pl.BlockSpec(memory_space=pltpu.MemorySpace.VMEM),   # A_hat (resident, single copy)
            pl.BlockSpec(memory_space=pltpu.MemorySpace.VMEM),   # local_preds
            pl.BlockSpec(memory_space=pltpu.MemorySpace.SMEM),   # idx (scalars)
        ],
        out_specs=pl.BlockSpec(memory_space=pltpu.MemorySpace.VMEM),
        scratch_shapes=[pltpu.VMEM((n_pad, f_pad), jnp.float32)],  # preds working buffer
        compiler_params=pltpu.CompilerParams(
            vmem_limit_bytes=_RESIDENT_VMEM_LIMIT),
    )(a, lp, idx_i32)
    return out[:, :F]


# ----------------------------------------------------------------------------
# Fallback kernel: one power-iteration step, A_hat streamed from HBM in tiles.
#   out = A_hat @ preds + alpha * local_preds, accumulated directly in out_ref.
# ----------------------------------------------------------------------------
def _stream_step_kernel(a_ref, p_ref, lp_ref, out_ref, *, alpha):
    k = pl.program_id(1)

    @pl.when(k == 0)
    def _():
        out_ref[...] = alpha * lp_ref[...]          # f32 init (out block is k-resident)

    out_ref[...] += jnp.dot(a_ref[...], p_ref[...].astype(a_ref.dtype),
                            preferred_element_type=jnp.float32)


def _make_stream_step(n_pad, f_pad, alpha, tile):
    grid = (n_pad // tile, n_pad // tile)           # (row tiles [parallel], k tiles [last])
    return pl.pallas_call(
        functools.partial(_stream_step_kernel, alpha=float(alpha)),
        out_shape=jax.ShapeDtypeStruct((n_pad, f_pad), jnp.float32),
        grid_spec=pltpu.PrefetchScalarGridSpec(
            num_scalar_prefetch=0,
            grid=grid,
            in_specs=[
                pl.BlockSpec((tile, tile), lambda i, k: (i, k)),     # A_hat tile (dominant stream)
                pl.BlockSpec((tile, f_pad), lambda i, k: (k, 0)),    # preds k-slab
                pl.BlockSpec((tile, f_pad), lambda i, k: (i, 0)),    # local_preds (k-resident)
            ],
            out_specs=pl.BlockSpec((tile, f_pad), lambda i, k: (i, 0)),
        ),
        compiler_params=pltpu.CompilerParams(
            dimension_semantics=("parallel", "arbitrary"),
            vmem_limit_bytes=_STREAM_VMEM_LIMIT),
    )


def _streaming_forward(a_hat, local_preds, idx_i32, *, alpha, niter, a_dtype, tile):
    N, F = local_preds.shape
    f_pad = _round_up(max(F, 1), 128)
    n_pad = _round_up(N, tile)                      # pad N so (8,128)-aligned tiles always divide

    a = _pad2(a_hat.astype(a_dtype), n_pad, n_pad)
    lp = _pad2(local_preds.astype(jnp.float32), n_pad, f_pad)

    step = _make_stream_step(n_pad, f_pad, alpha, tile)
    preds = lp
    for _ in range(niter):
        preds = step(a, preds, lp)

    # Final row gather: trivial indexing, done outside Pallas on this path.
    return jnp.take(preds, idx_i32, axis=0)[:, :F]


# ----------------------------------------------------------------------------
# forward(local_preds, idx)
# ----------------------------------------------------------------------------
def ppr_power_iteration(a_hat: jnp.ndarray, local_preds: jnp.ndarray,
                        idx: jnp.ndarray, *, alpha: float, niter: int,
                        a_dtype=jnp.bfloat16, force_stream: bool = False,
                        stream_tile: int = 512) -> jnp.ndarray:
    """Equivalent of PPRPowerIteration.forward with drop_prob=None."""
    N, F = local_preds.shape
    B = idx.shape[0]

    # Pallas does not bounds-check data-dependent row indices on TPU, so clamp
    # idx host-side (torch would raise; we pick the safe clamp).
    idx_i32 = jnp.clip(idx.astype(jnp.int32), 0, N - 1)

    f_pad = _round_up(max(F, 1), 128)
    n_pad = _round_up(N, 128)
    a_itemsize = np.dtype(a_dtype).itemsize
    resident_bytes = (n_pad * n_pad * a_itemsize        # A_hat (single-buffered)
                      + 2 * n_pad * f_pad * 4           # local_preds + preds scratch
                      + B * f_pad * 4)                  # gathered output

    if (not force_stream) and resident_bytes <= _RESIDENT_BUDGET_BYTES:
        out = _resident_forward(a_hat, local_preds, idx_i32,
                                alpha=alpha, niter=niter, a_dtype=a_dtype)
    else:
        out = _streaming_forward(a_hat, local_preds, idx_i32,
                                 alpha=alpha, niter=niter, a_dtype=a_dtype,
                                 tile=stream_tile)
    return out.astype(local_preds.dtype)


if __name__ == "__main__":
    N = 200       # graph nodes
    F = 10        # prediction / class dim
    B = 16        # query indices
    alpha = 0.1
    niter = 10

    key = jax.random.PRNGKey(0)
    k_adj, k_pred, k_idx = jax.random.split(key, 3)

    # Deterministic sparse-ish symmetric adjacency (dense stand-in for scipy input).
    u = jax.random.uniform(k_adj, (N, N))
    upper = jnp.triu((u < 0.05).astype(jnp.float32), k=1)
    adj = np.asarray(upper + upper.T, dtype=np.float64)

    a_hat_np = build_a_hat_buffer(adj, alpha)            # (1 - alpha) * A_hat, f32
    a_hat = jnp.asarray(a_hat_np)

    local_preds = jax.random.normal(k_pred, (N, F), dtype=jnp.float32)
    idx = jax.random.randint(k_idx, (B,), 0, N, dtype=jnp.int32)

    # float64 numpy reference of the module's forward
    lp64 = np.asarray(local_preds, dtype=np.float64)
    a64 = a_hat_np.astype(np.float64)
    preds64 = lp64.copy()
    for _ in range(niter):
        preds64 = a64 @ preds64 + alpha * lp64
    ref = preds64[np.asarray(idx)]

    # Tolerances accommodate the bf16 A_hat fast path (f32 accumulation keeps the
    # iteration stable); genuine functional bugs produce O(1) mismatches.
    RTOL, ATOL = 8e-2, 5e-2

    # 1) fused VMEM-resident kernel, f32 A_hat
    out_f32 = jax.block_until_ready(
        ppr_power_iteration(a_hat, local_preds, idx, alpha=alpha, niter=niter,
                            a_dtype=jnp.float32))
    assert out_f32.shape == (B, F)
    assert np.allclose(np.asarray(out_f32), ref, rtol=RTOL, atol=ATOL), \
        "resident f32 path mismatch vs reference"

    # 2) fused VMEM-resident kernel, bf16 A_hat (default fast path)
    out_bf16 = jax.block_until_ready(
        ppr_power_iteration(a_hat, local_preds, idx, alpha=alpha, niter=niter))
    assert out_bf16.shape == (B, F)
    assert np.allclose(np.asarray(out_bf16), ref, rtol=RTOL, atol=ATOL), \
        "resident bf16 path mismatch vs reference"

    # 3) streaming fallback path (forced with small tiles so the 2-D grid loops)
    out_stream = jax.block_until_ready(
        ppr_power_iteration(a_hat, local_preds, idx, alpha=alpha, niter=niter,
                            force_stream=True, stream_tile=128))
    assert out_stream.shape == (B, F)
    assert np.allclose(np.asarray(out_stream), ref, rtol=RTOL, atol=ATOL), \
        "streaming path mismatch vs reference"

    print("KERNEL_OK")
</pallas_src>

<mosaic_0001>
module attributes {stable_mosaic.version = 11 : i64} {
  func.func @_fused_ppr_kernel(%arg0: memref<256x256xf32, #tpu.memory_space<vmem>>, %arg1: memref<256x128xf32, #tpu.memory_space<vmem>>, %arg2: memref<16xi32, #tpu.memory_space<smem>>, %arg3: memref<16x128xf32, #tpu.memory_space<vmem>>, %arg4: memref<256x128xf32, #tpu.memory_space<vmem>>) attributes {dimension_semantics = [], scalar_prefetch = 0 : i64, scratch_operands = 1 : i64, tpu.core_type = #tpu.core_type<tc>} {
    %c0 = arith.constant 0 : index
    %c0_0 = arith.constant 0 : index
    %0 = vector.load %arg1[%c0, %c0_0] : memref<256x128xf32, #tpu.memory_space<vmem>>, vector<256x128xf32>
    %c0_1 = arith.constant 0 : index
    %c0_2 = arith.constant 0 : index
    %1 = vector.load %arg4[%c0_1, %c0_2] : memref<256x128xf32, #tpu.memory_space<vmem>>, vector<256x128xf32>
    tpu.vector_store %arg4[%c0_1, %c0_2], %0 {strides = array<i32>} : memref<256x128xf32, #tpu.memory_space<vmem>>, vector<256x128xf32>,
    %c0_i32 = arith.constant 0 : i32
    %c10_i32 = arith.constant 10 : i32
    %2 = arith.addi %c0_i32, %c10_i32 : i32
    %c1_i32 = arith.constant 1 : i32
    scf.for %arg5 = %c0_i32 to %2 step %c1_i32  : i32 {
      %c0_6 = arith.constant 0 : index
      %c0_7 = arith.constant 0 : index
      %4 = vector.load %arg4[%c0_6, %c0_7] : memref<256x128xf32, #tpu.memory_space<vmem>>, vector<256x128xf32>
      %c0_8 = arith.constant 0 : index
      %c0_9 = arith.constant 0 : index
      %5 = vector.load %arg0[%c0_8, %c0_9] : memref<256x256xf32, #tpu.memory_space<vmem>>, vector<256x256xf32>
      %cst = arith.constant dense<0.000000e+00> : vector<256x128xf32>
      %6 = tpu.matmul %5, %4, %cst {dimension_numbers = #tpu.dot_dimension_numbers<[1], [0], [0], [1], [0, 0, 1, 1], [], []>} : vector<256x256xf32>, vector<256x128xf32>, vector<256x128xf32> -> vector<256x128xf32>
      %c0_10 = arith.constant 0 : index
      %c0_11 = arith.constant 0 : index
      %7 = vector.load %arg1[%c0_10, %c0_11] : memref<256x128xf32, #tpu.memory_space<vmem>>, vector<256x128xf32>
      %cst_12 = arith.constant 1.000000e-01 : f32
      %8 = vector.broadcast %cst_12 : f32 to vector<256x128xf32>
      %9 = arith.mulf %8, %7 : vector<256x128xf32>
      %10 = arith.addf %6, %9 : vector<256x128xf32>
      %c0_13 = arith.constant 0 : index
      %c0_14 = arith.constant 0 : index
      %11 = vector.load %arg4[%c0_13, %c0_14] : memref<256x128xf32, #tpu.memory_space<vmem>>, vector<256x128xf32>
      tpu.vector_store %arg4[%c0_13, %c0_14], %10 {strides = array<i32>} : memref<256x128xf32, #tpu.memory_space<vmem>>, vector<256x128xf32>,
    }
    %c0_i32_3 = arith.constant 0 : i32
    %c16_i32 = arith.constant 16 : i32
    %3 = arith.addi %c0_i32_3, %c16_i32 : i32
    %c1_i32_4 = arith.constant 1 : i32
    scf.for %arg5 = %c0_i32_3 to %3 step %c1_i32_4  : i32 {
      %4 = arith.index_cast %arg5 : i32 to index
      %5 = memref.load %arg2[%4] : memref<16xi32, #tpu.memory_space<smem>>
      %6 = arith.index_cast %5 : i32 to index
      %c0_6 = arith.constant 0 : index
      %7 = vector.load %arg4[%6, %c0_6] : memref<256x128xf32, #tpu.memory_space<vmem>>, vector<1x128xf32>
      %8 = arith.index_cast %arg5 : i32 to index
      %c0_7 = arith.constant 0 : index
      %9 = vector.load %arg3[%8, %c0_7] : memref<16x128xf32, #tpu.memory_space<vmem>>, vector<1x128xf32>
      tpu.vector_store %arg3[%8, %c0_7], %7 {strides = array<i32>} : memref<16x128xf32, #tpu.memory_space<vmem>>, vector<1x128xf32>,
    }
    %c16_i32_5 = arith.constant 16 : i32
    return
  }
}

</mosaic_0001>

<llo_original>
// kernel: tpu_custom_call.1
$region0: #{tpu_custom_call.1}
  #allocation0 [shape = 'u32[]', space=smem, size = 0x4, offset = 0x4, fixed_abs, tag = 'smem constant byte address 0x4 - core index']
  #allocation1 [shape = 'u32[144,128]{1,0:T(1,128)}', space=vmem, size = 0x12000, scoped, tag = 'internal scratch']
  #allocation2 [shape = 'f32[256,128]{1,0:T(8,128)}', space=vmem, size = 0x20000, scoped, tag = 'scratch operand']
  %s0 = inlined_call_operand.hbm [shape: f32[256,256], index: 0, kind: input, shape index: {}]
  %s1 = inlined_call_operand.hbm [shape: f32[256,128], index: 1, kind: input, shape index: {}]
  %s2 = inlined_call_operand.vmem [shape: s32[16], index: 2, kind: input, shape index: {}]
  %s3 = inlined_call_operand.hbm [shape: f32[16,128], index: 3, kind: output, shape index: {}]
  %s4 = sld [smem:[#allocation0]]
  $region48: #{tpu_custom_call.1} parent=0
    _
  %s6 = ssub.s32 1, %s4
  %s7 = scalar_select 0, %s6, %s4
  $region1: #{tpu_custom_call.1} parent=0
    #allocation3 [shape = 'u8[262144]{0}', space=vmem, size = 0x40000, scoped, tag = 'input window, operand 0, single buffered']
    #allocation4 [shape = 's32[1]{0}', space=sflag, size = 0x4, scoped, tag = 'scoped memory for tpu_custom_call.1']
    #allocation5 [shape = 's32[1]{0}', space=sflag, size = 0x4, scoped, tag = 'scoped memory for tpu_custom_call.1']
    #allocation6 [shape = 's32[1]{0}', space=sflag, size = 0x4, scoped, tag = 'scoped memory for tpu_custom_call.1']
    #allocation7 [shape = 'u8[131072]{0}', space=vmem, size = 0x20000, scoped, tag = 'input window, operand 1, single buffered']
    #allocation8 [shape = 's32[1]{0}', space=sflag, size = 0x4, scoped, tag = 'scoped memory for tpu_custom_call.1']
    #allocation9 [shape = 'u8[512]{0}', space=smem, size = 0x200, scoped, tag = 'input window, operand 2, single buffered']
    #allocation10 [shape = 'u8[8192]{0}', space=vmem, size = 0x2000, scoped, tag = 'output window, operand 0, single buffered']
    %8 = vsyncpa [#allocation4], 0
    %9 = vsyncpa [#allocation8], 0
    %10 = vsyncpa [#allocation6], 0
    %11 = vsyncpa [#allocation5], 0
    // Predicated region
    $region2: #{tpu_custom_call.1} parent=1 // pred_check
      _
    $region3: #{tpu_custom_call.1} parent=1 // pred_check_branch
      %13 = sbr.rel (0) target = $region5
    $region4: #{tpu_custom_call.1} parent=1 // pred_region
      %s15 = ssub.s32 8192, 8192
      %16 = vsyncadd [#allocation4], %s15
      %s17 = sshll.u32 [#allocation3], 4
      %s18 = int_to_ptr.vmem [resolvable:$true] %s17
      %23 = dma.hbm_to_vmem [thread:$0]  %s0, 8192, %s18, [#allocation4], 256, 256, 16
    $region5: #{tpu_custom_call.1} parent=1 // pred_fallthru
      _
    // Predicated region
    $region6: #{tpu_custom_call.1} parent=1 // pred_check
      _
    $region7: #{tpu_custom_call.1} parent=1 // pred_check_branch
      %25 = sbr.rel (0) target = $region9
    $region8: #{tpu_custom_call.1} parent=1 // pred_region
      %s27 = ssub.s32 4096, 4096
      %28 = vsyncadd [#allocation8], %s27
      %s29 = sshll.u32 [#allocation7], 4
      %s30 = int_to_ptr.vmem [resolvable:$true] %s29
      %35 = dma.hbm_to_vmem [thread:$0]  %s1, 4096, %s30, [#allocation8], 128, 128, 8
    $region9: #{tpu_custom_call.1} parent=1 // pred_fallthru
      _
    // Predicated region
    $region10: #{tpu_custom_call.1} parent=1 // pred_check
      _
    $region11: #{tpu_custom_call.1} parent=1 // pred_check_branch
      %37 = sbr.rel (0) target = $region13
    $region12: #{tpu_custom_call.1} parent=1 // pred_region
      %s39 = ssub.s32 16, 16
      %40 = vsyncadd [#allocation6], %s39
      %s42 = sshll.u32 %s2, 4
      %s43 = int_to_ptr.vmem [resolvable:$true] %s42
      %45 = dma.vmem_to_smem %s43, 16, [#allocation9], [#allocation6]
    $region13: #{tpu_custom_call.1} parent=1 // pred_fallthru
      _
    // Predicated region
    $region14: #{tpu_custom_call.1} parent=1 // pred_check
      _
    $region15: #{tpu_custom_call.1} parent=1 // pred_check_branch
      %47 = sbr.rel (0) target = $region17
    $region16: #{tpu_custom_call.1} parent=1 // pred_region
      %48 = dma.done [#allocation4], 8192
    $region17: #{tpu_custom_call.1} parent=1 // pred_fallthru
      _
    // Predicated region
    $region18: #{tpu_custom_call.1} parent=1 // pred_check
      _
    $region19: #{tpu_custom_call.1} parent=1 // pred_check_branch
      %50 = sbr.rel (0) target = $region21
    $region20: #{tpu_custom_call.1} parent=1 // pred_region
      %51 = dma.done [#allocation8], 4096
    $region21: #{tpu_custom_call.1} parent=1 // pred_fallthru
      _
    // Predicated region
    $region22: #{tpu_custom_call.1} parent=1 // pred_check
      _
    $region23: #{tpu_custom_call.1} parent=1 // pred_check_branch
      %53 = sbr.rel (0) target = $region25
    $region24: #{tpu_custom_call.1} parent=1 // pred_region
      %54 = dma.done [#allocation6], 16
    $region25: #{tpu_custom_call.1} parent=1 // pred_fallthru
      _
    %55 = sfence
    %v56 = vld [vmem:[#allocation7] sm:$0xff]
    %v57 = vld [vmem:[#allocation7 + $0x8] sm:$0xff]
    %v58 = vld [vmem:[#allocation7 + $0x10] sm:$0xff]
    %v59 = vld [vmem:[#allocation7 + $0x18] sm:$0xff]
    %v60 = vld [vmem:[#allocation7 + $0x20] sm:$0xff]
    %v61 = vld [vmem:[#allocation7 + $0x28] sm:$0xff]
    %v62 = vld [vmem:[#allocation7 + $0x30] sm:$0xff]
    %v63 = vld [vmem:[#allocation7 + $0x38] sm:$0xff]
    %v64 = vld [vmem:[#allocation7 + $0x40] sm:$0xff]
    %v65 = vld [vmem:[#allocation7 + $0x48] sm:$0xff]
    %v66 = vld [vmem:[#allocation7 + $0x50] sm:$0xff]
    %v67 = vld [vmem:[#allocation7 + $0x58] sm:$0xff]
    %v68 = vld [vmem:[#allocation7 + $0x60] sm:$0xff]
    %v69 = vld [vmem:[#allocation7 + $0x68] sm:$0xff]
    %v70 = vld [vmem:[#allocation7 + $0x70] sm:$0xff]
    %v71 = vld [vmem:[#allocation7 + $0x78] sm:$0xff]
    %v72 = vld [vmem:[#allocation7 + $0x80] sm:$0xff]
    %v73 = vld [vmem:[#allocation7 + $0x88] sm:$0xff]
    %v74 = vld [vmem:[#allocation7 + $0x90] sm:$0xff]
    %v75 = vld [vmem:[#allocation7 + $0x98] sm:$0xff]
    %v76 = vld [vmem:[#allocation7 + $0xa0] sm:$0xff]
    %v77 = vld [vmem:[#allocation7 + $0xa8] sm:$0xff]
    %v78 = vld [vmem:[#allocation7 + $0xb0] sm:$0xff]
    %v79 = vld [vmem:[#allocation7 + $0xb8] sm:$0xff]
    %v80 = vld [vmem:[#allocation7 + $0xc0] sm:$0xff]
    %v81 = vld [vmem:[#allocation7 + $0xc8] sm:$0xff]
    %v82 = vld [vmem:[#allocation7 + $0xd0] sm:$0xff]
    %v83 = vld [vmem:[#allocation7 + $0xd8] sm:$0xff]
    %v84 = vld [vmem:[#allocation7 + $0xe0] sm:$0xff]
    %v85 = vld [vmem:[#allocation7 + $0xe8] sm:$0xff]
    %v86 = vld [vmem:[#allocation7 + $0xf0] sm:$0xff]
    %v87 = vld [vmem:[#allocation7 + $0xf8] sm:$0xff]
    %88 = vst [vmem:[#allocation2] sm:$0xff] %v56
    %89 = vst [vmem:[#allocation2 + $0x8] sm:$0xff] %v57
    %90 = vst [vmem:[#allocation2 + $0x10] sm:$0xff] %v58
    %91 = vst [vmem:[#allocation2 + $0x18] sm:$0xff] %v59
    %92 = vst [vmem:[#allocation2 + $0x20] sm:$0xff] %v60
    %93 = vst [vmem:[#allocation2 + $0x28] sm:$0xff] %v61
    %94 = vst [vmem:[#allocation2 + $0x30] sm:$0xff] %v62
    %95 = vst [vmem:[#allocation2 + $0x38] sm:$0xff] %v63
    %96 = vst [vmem:[#allocation2 + $0x40] sm:$0xff] %v64
    %97 = vst [vmem:[#allocation2 + $0x48] sm:$0xff] %v65
    %98 = vst [vmem:[#allocation2 + $0x50] sm:$0xff] %v66
    %99 = vst [vmem:[#allocation2 + $0x58] sm:$0xff] %v67
    %100 = vst [vmem:[#allocation2 + $0x60] sm:$0xff] %v68
    %101 = vst [vmem:[#allocation2 + $0x68] sm:$0xff] %v69
    %102 = vst [vmem:[#allocation2 + $0x70] sm:$0xff] %v70
    %103 = vst [vmem:[#allocation2 + $0x78] sm:$0xff] %v71
    %104 = vst [vmem:[#allocation2 + $0x80] sm:$0xff] %v72
    %105 = vst [vmem:[#allocation2 + $0x88] sm:$0xff] %v73
    %106 = vst [vmem:[#allocation2 + $0x90] sm:$0xff] %v74
    %107 = vst [vmem:[#allocation2 + $0x98] sm:$0xff] %v75
    %108 = vst [vmem:[#allocation2 + $0xa0] sm:$0xff] %v76
    %109 = vst [vmem:[#allocation2 + $0xa8] sm:$0xff] %v77
    %110 = vst [vmem:[#allocation2 + $0xb0] sm:$0xff] %v78
    %111 = vst [vmem:[#allocation2 + $0xb8] sm:$0xff] %v79
    %112 = vst [vmem:[#allocation2 + $0xc0] sm:$0xff] %v80
    %113 = vst [vmem:[#allocation2 + $0xc8] sm:$0xff] %v81
    %114 = vst [vmem:[#allocation2 + $0xd0] sm:$0xff] %v82
    %115 = vst [vmem:[#allocation2 + $0xd8] sm:$0xff] %v83
    %116 = vst [vmem:[#allocation2 + $0xe0] sm:$0xff] %v84
    %117 = vst [vmem:[#allocation2 + $0xe8] sm:$0xff] %v85
    %118 = vst [vmem:[#allocation2 + $0xf0] sm:$0xff] %v86
    %119 = vst [vmem:[#allocation2 + $0xf8] sm:$0xff] %v87
    loop: start=0, step=1, limit=10
    $region26: #{tpu_custom_call.1} parent=1 // loop_pre_header
      _
    $region27: #{tpu_custom_call.1} parent=1 // loop_header
      %s121 = sphi 0, %s125
      %p122 = scmp.ge.s32.totalorder %s121, 10
    $region28: #{tpu_custom_call.1} parent=1 // loop_header_branch
      %124 = sbr.rel (%p122) target = $region32
    $region29: #{tpu_custom_call.1} parent=1 // loop_body
      %v126 = vld [vmem:[#allocation2] sm:$0xff]
      %v127 = vld [vmem:[#allocation2 + $0x8] sm:$0xff]
      %v128 = vld [vmem:[#allocation2 + $0x10] sm:$0xff]
      %v129 = vld [vmem:[#allocation2 + $0x18] sm:$0xff]
      %v130 = vld [vmem:[#allocation2 + $0x20] sm:$0xff]
      %v131 = vld [vmem:[#allocation2 + $0x28] sm:$0xff]
      %v132 = vld [vmem:[#allocation2 + $0x30] sm:$0xff]
      %v133 = vld [vmem:[#allocation2 + $0x38] sm:$0xff]
      %v134 = vld [vmem:[#allocation2 + $0x40] sm:$0xff]
      %v135 = vld [vmem:[#allocation2 + $0x48] sm:$0xff]
      %v136 = vld [vmem:[#allocation2 + $0x50] sm:$0xff]
      %v137 = vld [vmem:[#allocation2 + $0x58] sm:$0xff]
      %v138 = vld [vmem:[#allocation2 + $0x60] sm:$0xff]
      %v139 = vld [vmem:[#allocation2 + $0x68] sm:$0xff]
      %v140 = vld [vmem:[#allocation2 + $0x70] sm:$0xff]
      %v141 = vld [vmem:[#allocation2 + $0x78] sm:$0xff]
      %v142 = vld [vmem:[#allocation2 + $0x80] sm:$0xff]
      %v143 = vld [vmem:[#allocation2 + $0x88] sm:$0xff]
      %v144 = vld [vmem:[#allocation2 + $0x90] sm:$0xff]
      %v145 = vld [vmem:[#allocation2 + $0x98] sm:$0xff]
      %v146 = vld [vmem:[#allocation2 + $0xa0] sm:$0xff]
      %v147 = vld [vmem:[#allocation2 + $0xa8] sm:$0xff]
      %v148 = vld [vmem:[#allocation2 + $0xb0] sm:$0xff]
      %v149 = vld [vmem:[#allocation2 + $0xb8] sm:$0xff]
      %v150 = vld [vmem:[#allocation2 + $0xc0] sm:$0xff]
      %v151 = vld [vmem:[#allocation2 + $0xc8] sm:$0xff]
      %v152 = vld [vmem:[#allocation2 + $0xd0] sm:$0xff]
      %v153 = vld [vmem:[#allocation2 + $0xd8] sm:$0xff]
      %v154 = vld [vmem:[#allocation2 + $0xe0] sm:$0xff]
      %v155 = vld [vmem:[#allocation2 + $0xe8] sm:$0xff]
      %v156 = vld [vmem:[#allocation2 + $0xf0] sm:$0xff]
      %v157 = vld [vmem:[#allocation2 + $0xf8] sm:$0xff]
      %v158 = vld [vmem:[#allocation3] sm:$0xff]
      %v159 = vld [vmem:[#allocation3 + $0x8] sm:$0xff]
      %v160 = vld [vmem:[#allocation3 + $0x10] sm:$0xff]
      %v161 = vld [vmem:[#allocation3 + $0x18] sm:$0xff]
      %v162 = vld [vmem:[#allocation3 + $0x20] sm:$0xff]
      %v163 = vld [vmem:[#allocation3 + $0x28] sm:$0xff]
      %v164 = vld [vmem:[#allocation3 + $0x30] sm:$0xff]
      %v165 = vld [vmem:[#allocation3 + $0x38] sm:$0xff]
      %v166 = vld [vmem:[#allocation3 + $0x40] sm:$0xff]
      %v167 = vld [vmem:[#allocation3 + $0x48] sm:$0xff]
      %v168 = vld [vmem:[#allocation3 + $0x50] sm:$0xff]
      %v169 = vld [vmem:[#allocation3 + $0x58] sm:$0xff]
      %v170 = vld [vmem:[#allocation3 + $0x60] sm:$0xff]
      %v171 = vld [vmem:[#allocation3 + $0x68] sm:$0xff]
      %v172 = vld [vmem:[#allocation3 + $0x70] sm:$0xff]
      %v173 = vld [vmem:[#allocation3 + $0x78] sm:$0xff]
      %v174 = vld [vmem:[#allocation3 + $0x80] sm:$0xff]
      %v175 = vld [vmem:[#allocation3 + $0x88] sm:$0xff]
      %v176 = vld [vmem:[#allocation3 + $0x90] sm:$0xff]
      %v177 = vld [vmem:[#allocation3 + $0x98] sm:$0xff]
      %v178 = vld [vmem:[#allocation3 + $0xa0] sm:$0xff]
      %v179 = vld [vmem:[#allocation3 + $0xa8] sm:$0xff]
      %v180 = vld [vmem:[#allocation3 + $0xb0] sm:$0xff]
      %v181 = vld [vmem:[#allocation3 + $0xb8] sm:$0xff]
      %v182 = vld [vmem:[#allocation3 + $0xc0] sm:$0xff]
      %v183 = vld [vmem:[#allocation3 + $0xc8] sm:$0xff]
      %v184 = vld [vmem:[#allocation3 + $0xd0] sm:$0xff]
      %v185 = vld [vmem:[#allocation3 + $0xd8] sm:$0xff]
      %v186 = vld [vmem:[#allocation3 + $0xe0] sm:$0xff]
      %v187 = vld [vmem:[#allocation3 + $0xe8] sm:$0xff]
      %v188 = vld [vmem:[#allocation3 + $0xf0] sm:$0xff]
      %v189 = vld [vmem:[#allocation3 + $0xf8] sm:$0xff]
      %v190 = vld [vmem:[#allocation3 + $0x100] sm:$0xff]
      %v191 = vld [vmem:[#allocation3 + $0x108] sm:$0xff]
      %v192 = vld [vmem:[#allocation3 + $0x110] sm:$0xff]
      %v193 = vld [vmem:[#allocation3 + $0x118] sm:$0xff]
      %v194 = vld [vmem:[#allocation3 + $0x120] sm:$0xff]
      %v195 = vld [vmem:[#allocation3 + $0x128] sm:$0xff]
      %v196 = vld [vmem:[#allocation3 + $0x130] sm:$0xff]
      %v197 = vld [vmem:[#allocation3 + $0x138] sm:$0xff]
      %v198 = vld [vmem:[#allocation3 + $0x140] sm:$0xff]
      %v199 = vld [vmem:[#allocation3 + $0x148] sm:$0xff]
      %v200 = vld [vmem:[#allocation3 + $0x150] sm:$0xff]
      %v201 = vld [vmem:[#allocation3 + $0x158] sm:$0xff]
      %v202 = vld [vmem:[#allocation3 + $0x160] sm:$0xff]
      %v203 = vld [vmem:[#allocation3 + $0x168] sm:$0xff]
      %v204 = vld [vmem:[#allocation3 + $0x170] sm:$0xff]
      %v205 = vld [vmem:[#allocation3 + $0x178] sm:$0xff]
      %v206 = vld [vmem:[#allocation3 + $0x180] sm:$0xff]
      %v207 = vld [vmem:[#allocation3 + $0x188] sm:$0xff]
      %v208 = vld [vmem:[#allocation3 + $0x190] sm:$0xff]
      %v209 = vld [vmem:[#allocation3 + $0x198] sm:$0xff]
      %v210 = vld [vmem:[#allocation3 + $0x1a0] sm:$0xff]
      %v211 = vld [vmem:[#allocation3 + $0x1a8] sm:$0xff]
      %v212 = vld [vmem:[#allocation3 + $0x1b0] sm:$0xff]
      %v213 = vld [vmem:[#allocation3 + $0x1b8] sm:$0xff]
      %v214 = vld [vmem:[#allocation3 + $0x1c0] sm:$0xff]
      %v215 = vld [vmem:[#allocation3 + $0x1c8] sm:$0xff]
      %v216 = vld [vmem:[#allocation3 + $0x1d0] sm:$0xff]
      %v217 = vld [vmem:[#allocation3 + $0x1d8] sm:$0xff]
      %v218 = vld [vmem:[#allocation3 + $0x1e0] sm:$0xff]
      %v219 = vld [vmem:[#allocation3 + $0x1e8] sm:$0xff]
      %v220 = vld [vmem:[#allocation3 + $0x1f0] sm:$0xff]
      %v221 = vld [vmem:[#allocation3 + $0x1f8] sm:$0xff]
      %v222 = vld [vmem:[#allocation7] sm:$0xff]
      %v223 = vld [vmem:[#allocation7 + $0x8] sm:$0xff]
      %v224 = vld [vmem:[#allocation7 + $0x10] sm:$0xff]
      %v225 = vld [vmem:[#allocation7 + $0x18] sm:$0xff]
      %v226 = vld [vmem:[#allocation7 + $0x20] sm:$0xff]
      %v227 = vld [vmem:[#allocation7 + $0x28] sm:$0xff]
      %v228 = vld [vmem:[#allocation7 + $0x30] sm:$0xff]
      %v229 = vld [vmem:[#allocation7 + $0x38] sm:$0xff]
      %v230 = vld [vmem:[#allocation7 + $0x40] sm:$0xff]
      %v231 = vld [vmem:[#allocation7 + $0x48] sm:$0xff]
      %v232 = vld [vmem:[#allocation7 + $0x50] sm:$0xff]
      %v233 = vld [vmem:[#allocation7 + $0x58] sm:$0xff]
      %v234 = vld [vmem:[#allocation7 + $0x60] sm:$0xff]
      %v235 = vld [vmem:[#allocation7 + $0x68] sm:$0xff]
      %v236 = vld [vmem:[#allocation7 + $0x70] sm:$0xff]
      %v237 = vld [vmem:[#allocation7 + $0x78] sm:$0xff]
      %v238 = vld [vmem:[#allocation7 + $0x80] sm:$0xff]
      %v239 = vld [vmem:[#allocation7 + $0x88] sm:$0xff]
      %v240 = vld [vmem:[#allocation7 + $0x90] sm:$0xff]
      %v241 = vld [vmem:[#allocation7 + $0x98] sm:$0xff]
      %v242 = vld [vmem:[#allocation7 + $0xa0] sm:$0xff]
      %v243 = vld [vmem:[#allocation7 + $0xa8] sm:$0xff]
      %v244 = vld [vmem:[#allocation7 + $0xb0] sm:$0xff]
      %v245 = vld [vmem:[#allocation7 + $0xb8] sm:$0xff]
      %v246 = vld [vmem:[#allocation7 + $0xc0] sm:$0xff]
      %v247 = vld [vmem:[#allocation7 + $0xc8] sm:$0xff]
      %v248 = vld [vmem:[#allocation7 + $0xd0] sm:$0xff]
      %v249 = vld [vmem:[#allocation7 + $0xd8] sm:$0xff]
      %v250 = vld [vmem:[#allocation7 + $0xe0] sm:$0xff]
      %v251 = vld [vmem:[#allocation7 + $0xe8] sm:$0xff]
      %v252 = vld [vmem:[#allocation7 + $0xf0] sm:$0xff]
      %v253 = vld [vmem:[#allocation7 + $0xf8] sm:$0xff]
      %v254 = vmul.f32 %v222, 0.1
      %v255 = vmul.f32 %v223, 0.1
      %v256 = vmul.f32 %v224, 0.1
      %v257 = vmul.f32 %v225, 0.1
      %v258 = vmul.f32 %v226, 0.1
      %v259 = vmul.f32 %v227, 0.1
      %v260 = vmul.f32 %v228, 0.1
      %v261 = vmul.f32 %v229, 0.1
      %v262 = vmul.f32 %v230, 0.1
      %v263 = vmul.f32 %v231, 0.1
      %v264 = vmul.f32 %v232, 0.1
      %v265 = vmul.f32 %v233, 0.1
      %v266 = vmul.f32 %v234, 0.1
      %v267 = vmul.f32 %v235, 0.1
      %v268 = vmul.f32 %v236, 0.1
      %v269 = vmul.f32 %v237, 0.1
      %v270 = vmul.f32 %v238, 0.1
      %v271 = vmul.f32 %v239, 0.1
      %v272 = vmul.f32 %v240, 0.1
      %v273 = vmul.f32 %v241, 0.1
      %v274 = vmul.f32 %v242, 0.1
      %v275 = vmul.f32 %v243, 0.1
      %v276 = vmul.f32 %v244, 0.1
      %v277 = vmul.f32 %v245, 0.1
      %v278 = vmul.f32 %v246, 0.1
      %v279 = vmul.f32 %v247, 0.1
      %v280 = vmul.f32 %v248, 0.1
      %v281 = vmul.f32 %v249, 0.1
      %v282 = vmul.f32 %v250, 0.1
      %v283 = vmul.f32 %v251, 0.1
      %v284 = vmul.f32 %v252, 0.1
      %v285 = vmul.f32 %v253, 0.1
      %286 = vmatprep.subr.mxu0 0.0
      %287 = vmatpush1.msra.mxu0 %v126
      %288 = vmatprep.subr.mxu0 0.0
      %289 = vmatpush1.msra.mxu0 %v127
      %290 = vmatprep.subr.mxu0 0.0
      %291 = vmatpush1.msra.mxu0 %v128
      %292 = vmatprep.subr.mxu0 0.0
      %293 = vmatpush1.msra.mxu0 %v129
      %294 = vmatprep.subr.mxu0 0.0
      %295 = vmatpush1.msra.mxu0 %v130
      %296 = vmatprep.subr.mxu0 0.0
      %297 = vmatpush1.msra.mxu0 %v131
      %298 = vmatprep.subr.mxu0 0.0
      %299 = vmatpush1.msra.mxu0 %v132
      %300 = vmatprep.subr.mxu0 0.0
      %301 = vmatpush1.msra.mxu0 %v133
      %302 = vmatprep.subr.mxu0 0.0
      %303 = vmatpush1.msra.mxu0 %v134
      %304 = vmatprep.subr.mxu0 0.0
      %305 = vmatpush1.msra.mxu0 %v135
      %306 = vmatprep.subr.mxu0 0.0
      %307 = vmatpush1.msra.mxu0 %v136
      %308 = vmatprep.subr.mxu0 0.0
      %309 = vmatpush1.msra.mxu0 %v137
      %310 = vmatprep.subr.mxu0 0.0
      %311 = vmatpush1.msra.mxu0 %v138
      %312 = vmatprep.subr.mxu0 0.0
      %313 = vmatpush1.msra.mxu0 %v139
      %314 = vmatprep.subr.mxu0 0.0
      %315 = vmatpush1.msra.mxu0 %v140
      %316 = vmatprep.subr.mxu0 0.0
      %317 = vmatpush1.msra.mxu0 %v141
      %318 = vmatprep.subr.mxu0 0.0
      %319 = vmatpush1.msra.mxu0 %v142
      %320 = vmatprep.subr.mxu0 0.0
      %321 = vmatpush1.msra.mxu0 %v143
      %322 = vmatprep.subr.mxu0 0.0
      %323 = vmatpush1.msra.mxu0 %v144
      %324 = vmatprep.subr.mxu0 0.0
      %325 = vmatpush1.msra.mxu0 %v145
      %326 = vmatprep.subr.mxu0 0.0
      %327 = vmatpush1.msra.mxu0 %v146
      %328 = vmatprep.subr.mxu0 0.0
      %329 = vmatpush1.msra.mxu0 %v147
      %330 = vmatprep.subr.mxu0 0.0
      %331 = vmatpush1.msra.mxu0 %v148
      %332 = vmatprep.subr.mxu0 0.0
      %333 = vmatpush1.msra.mxu0 %v149
      %334 = vmatprep.subr.mxu0 0.0
      %335 = vmatpush1.msra.mxu0 %v150
      %336 = vmatprep.subr.mxu0 0.0
      %337 = vmatpush1.msra.mxu0 %v151
      %338 = vmatprep.subr.mxu0 0.0
      %339 = vmatpush1.msra.mxu0 %v152
      %340 = vmatprep.subr.mxu0 0.0
      %341 = vmatpush1.msra.mxu0 %v153
      %342 = vmatprep.subr.mxu0 0.0
      %343 = vmatpush1.msra.mxu0 %v154
      %344 = vmatprep.subr.mxu0 0.0
      %345 = vmatpush1.msra.mxu0 %v155
      %346 = vmatprep.subr.mxu0 0.0
      %347 = vmatpush1.msra.mxu0 %v156
      %348 = vmatprep.subr.mxu0 0.0
      %349 = vmatpush1.msra.mxu0 %v157
      %350 = vmatprep.mubr.f32.mxu0 %v159
      %351 = vmatmul.mubr.f32.gmra.mrb[0].mxu0 %v158
      %v352 = vpop.f32.mrb[0].mxu0
      %v353 = vadd.f32 %v254, %v352
      %v354 = vpop.f32.mrb[0].mxu0
      %355 = vmatprep.mubr.f32.mxu0 %v161
      %356 = vmatmul.mubr.f32.gmra.mrb[0].mxu0 %v160
      %v357 = vpop.f32.mrb[0].mxu0
      %v358 = vadd.f32 %v255, %v357
      %v359 = vpop.f32.mrb[0].mxu0
      %360 = vmatprep.mubr.f32.mxu0 %v163
      %361 = vmatmul.mubr.f32.gmra.mrb[0].mxu0 %v162
      %v362 = vpop.f32.mrb[0].mxu0
      %v363 = vadd.f32 %v256, %v362
      %v364 = vpop.f32.mrb[0].mxu0
      %365 = vmatprep.mubr.f32.mxu0 %v165
      %366 = vmatmul.mubr.f32.gmra.mrb[0].mxu0 %v164
      %v367 = vpop.f32.mrb[0].mxu0
      %v368 = vadd.f32 %v257, %v367
      %v369 = vpop.f32.mrb[0].mxu0
      %370 = vmatprep.mubr.f32.mxu0 %v167
      %371 = vmatmul.mubr.f32.gmra.mrb[0].mxu0 %v166
      %v372 = vpop.f32.mrb[0].mxu0
      %v373 = vadd.f32 %v258, %v372
      %v374 = vpop.f32.mrb[0].mxu0
      %375 = vmatprep.mubr.f32.mxu0 %v169
      %376 = vmatmul.mubr.f32.gmra.mrb[0].mxu0 %v168
      %v377 = vpop.f32.mrb[0].mxu0
      %v378 = vadd.f32 %v259, %v377
      %v379 = vpop.f32.mrb[0].mxu0
      %380 = vmatprep.mubr.f32.mxu0 %v171
      %381 = vmatmul.mubr.f32.gmra.mrb[0].mxu0 %v170
      %v382 = vpop.f32.mrb[0].mxu0
      %v383 = vadd.f32 %v260, %v382
      %v384 = vpop.f32.mrb[0].mxu0
      %385 = vmatprep.mubr.f32.mxu0 %v173
      %386 = vmatmul.mubr.f32.gmra.mrb[0].mxu0 %v172
      %v387 = vpop.f32.mrb[0].mxu0
      %v388 = vadd.f32 %v261, %v387
      %v389 = vpop.f32.mrb[0].mxu0
      %390 = vmatprep.mubr.f32.mxu0 %v175
      %391 = vmatmul.mubr.f32.gmra.mrb[0].mxu0 %v174
      %v392 = vpop.f32.mrb[0].mxu0
      %v393 = vadd.f32 %v262, %v392
      %v394 = vpop.f32.mrb[0].mxu0
      %395 = vmatprep.mubr.f32.mxu0 %v177
      %396 = vmatmul.mubr.f32.gmra.mrb[0].mxu0 %v176
      %v397 = vpop.f32.mrb[0].mxu0
      %v398 = vadd.f32 %v263, %v397
      %v399 = vpop.f32.mrb[0].mxu0
      %400 = vmatprep.mubr.f32.mxu0 %v179
      %401 = vmatmul.mubr.f32.gmra.mrb[0].mxu0 %v178
      %v402 = vpop.f32.mrb[0].mxu0
      %v403 = vadd.f32 %v264, %v402
      %v404 = vpop.f32.mrb[0].mxu0
      %405 = vmatprep.mubr.f32.mxu0 %v181
      %406 = vmatmul.mubr.f32.gmra.mrb[0].mxu0 %v180
      %v407 = vpop.f32.mrb[0].mxu0
      %v408 = vadd.f32 %v265, %v407
      %v409 = vpop.f32.mrb[0].mxu0
      %410 = vmatprep.mubr.f32.mxu0 %v183
      %411 = vmatmul.mubr.f32.gmra.mrb[0].mxu0 %v182
      %v412 = vpop.f32.mrb[0].mxu0
      %v413 = vadd.f32 %v266, %v412
      %v414 = vpop.f32.mrb[0].mxu0
      %415 = vmatprep.mubr.f32.mxu0 %v185
      %416 = vmatmul.mubr.f32.gmra.mrb[0].mxu0 %v184
      %v417 = vpop.f32.mrb[0].mxu0
      %v418 = vadd.f32 %v267, %v417
      %v419 = vpop.f32.mrb[0].mxu0
      %420 = vmatprep.mubr.f32.mxu0 %v187
      %421 = vmatmul.mubr.f32.gmra.mrb[0].mxu0 %v186
      %v422 = vpop.f32.mrb[0].mxu0
      %v423 = vadd.f32 %v268, %v422
      %v424 = vpop.f32.mrb[0].mxu0
      %425 = vmatprep.mubr.f32.mxu0 %v189
      %426 = vmatmul.mubr.f32.gmra.mrb[0].mxu0 %v188
      %v427 = vpop.f32.mrb[0].mxu0
      %v428 = vadd.f32 %v269, %v427
      %v429 = vpop.f32.mrb[0].mxu0
      %430 = vmatprep.mubr.f32.mxu0 %v191
      %431 = vmatmul.mubr.f32.gmra.mrb[0].mxu0 %v190
      %v432 = vpop.f32.mrb[0].mxu0
      %v433 = vadd.f32 %v270, %v432
      %v434 = vpop.f32.mrb[0].mxu0
      %435 = vmatprep.mubr.f32.mxu0 %v193
      %436 = vmatmul.mubr.f32.gmra.mrb[0].mxu0 %v192
      %v437 = vpop.f32.mrb[0].mxu0
      %v438 = vadd.f32 %v271, %v437
      %v439 = vpop.f32.mrb[0].mxu0
      %440 = vmatprep.mubr.f32.mxu0 %v195
      %441 = vmatmul.mubr.f32.gmra.mrb[0].mxu0 %v194
      %v442 = vpop.f32.mrb[0].mxu0
      %v443 = vadd.f32 %v272, %v442
      %v444 = vpop.f32.mrb[0].mxu0
      %445 = vmatprep.mubr.f32.mxu0 %v197
      %446 = vmatmul.mubr.f32.gmra.mrb[0].mxu0 %v196
      %v447 = vpop.f32.mrb[0].mxu0
      %v448 = vadd.f32 %v273, %v447
      %v449 = vpop.f32.mrb[0].mxu0
      %450 = vmatprep.mubr.f32.mxu0 %v199
      %451 = vmatmul.mubr.f32.gmra.mrb[0].mxu0 %v198
      %v452 = vpop.f32.mrb[0].mxu0
      %v453 = vadd.f32 %v274, %v452
      %v454 = vpop.f32.mrb[0].mxu0
      %455 = vmatprep.mubr.f32.mxu0 %v201
      %456 = vmatmul.mubr.f32.gmra.mrb[0].mxu0 %v200
      %v457 = vpop.f32.mrb[0].mxu0
      %v458 = vadd.f32 %v275, %v457
      %v459 = vpop.f32.mrb[0].mxu0
      %460 = vmatprep.mubr.f32.mxu0 %v203
      %461 = vmatmul.mubr.f32.gmra.mrb[0].mxu0 %v202
      %v462 = vpop.f32.mrb[0].mxu0
      %v463 = vadd.f32 %v276, %v462
      %v464 = vpop.f32.mrb[0].mxu0
      %465 = vmatprep.mubr.f32.mxu0 %v205
      %466 = vmatmul.mubr.f32.gmra.mrb[0].mxu0 %v204
      %v467 = vpop.f32.mrb[0].mxu0
      %v468 = vadd.f32 %v277, %v467
      %v469 = vpop.f32.mrb[0].mxu0
      %470 = vmatprep.mubr.f32.mxu0 %v207
      %471 = vmatmul.mubr.f32.gmra.mrb[0].mxu0 %v206
      %v472 = vpop.f32.mrb[0].mxu0
      %v473 = vadd.f32 %v278, %v472
      %v474 = vpop.f32.mrb[0].mxu0
      %475 = vmatprep.mubr.f32.mxu0 %v209
      %476 = vmatmul.mubr.f32.gmra.mrb[0].mxu0 %v208
      %v477 = vpop.f32.mrb[0].mxu0
      %v478 = vadd.f32 %v279, %v477
      %v479 = vpop.f32.mrb[0].mxu0
      %480 = vmatprep.mubr.f32.mxu0 %v211
      %481 = vmatmul.mubr.f32.gmra.mrb[0].mxu0 %v210
      %v482 = vpop.f32.mrb[0].mxu0
      %v483 = vadd.f32 %v280, %v482
      %v484 = vpop.f32.mrb[0].mxu0
      %485 = vmatprep.mubr.f32.mxu0 %v213
      %486 = vmatmul.mubr.f32.gmra.mrb[0].mxu0 %v212
      %v487 = vpop.f32.mrb[0].mxu0
      %v488 = vadd.f32 %v281, %v487
      %v489 = vpop.f32.mrb[0].mxu0
      %490 = vmatprep.mubr.f32.mxu0 %v215
      %491 = vmatmul.mubr.f32.gmra.mrb[0].mxu0 %v214
      %v492 = vpop.f32.mrb[0].mxu0
      %v493 = vadd.f32 %v282, %v492
      %v494 = vpop.f32.mrb[0].mxu0
      %495 = vmatprep.mubr.f32.mxu0 %v217
      %496 = vmatmul.mubr.f32.gmra.mrb[0].mxu0 %v216
      %v497 = vpop.f32.mrb[0].mxu0
      %v498 = vadd.f32 %v283, %v497
      %v499 = vpop.f32.mrb[0].mxu0
      %500 = vmatprep.mubr.f32.mxu0 %v219
      %501 = vmatmul.mubr.f32.gmra.mrb[0].mxu0 %v218
      %v502 = vpop.f32.mrb[0].mxu0
      %v503 = vadd.f32 %v284, %v502
      %v504 = vpop.f32.mrb[0].mxu0
      %505 = vmatprep.mubr.f32.mxu0 %v221
      %506 = vmatmul.mubr.f32.gmra.mrb[0].mxu0 %v220
      %v507 = vpop.f32.mrb[0].mxu0
      %v508 = vadd.f32 %v285, %v507
      %v509 = vpop.f32.mrb[0].mxu0
      %510 = vdwg.mxu0
      %511 = vst [vmem:[#allocation2] sm:$0xff] %v353
      %512 = vst [vmem:[#allocation2 + $0x8] sm:$0xff] %v358
      %513 = vst [vmem:[#allocation2 + $0x10] sm:$0xff] %v363
      %514 = vst [vmem:[#allocation2 + $0x18] sm:$0xff] %v368
      %515 = vst [vmem:[#allocation2 + $0x20] sm:$0xff] %v373
      %516 = vst [vmem:[#allocation2 + $0x28] sm:$0xff] %v378
      %517 = vst [vmem:[#allocation2 + $0x30] sm:$0xff] %v383
      %518 = vst [vmem:[#allocation2 + $0x38] sm:$0xff] %v388
      %519 = vst [vmem:[#allocation2 + $0x40] sm:$0xff] %v393
      %520 = vst [vmem:[#allocation2 + $0x48] sm:$0xff] %v398
      %521 = vst [vmem:[#allocation2 + $0x50] sm:$0xff] %v403
      %522 = vst [vmem:[#allocation2 + $0x58] sm:$0xff] %v408
      %523 = vst [vmem:[#allocation2 + $0x60] sm:$0xff] %v413
      %524 = vst [vmem:[#allocation2 + $0x68] sm:$0xff] %v418
      %525 = vst [vmem:[#allocation2 + $0x70] sm:$0xff] %v423
      %526 = vst [vmem:[#allocation2 + $0x78] sm:$0xff] %v428
      %527 = vst [vmem:[#allocation2 + $0x80] sm:$0xff] %v433
      %528 = vst [vmem:[#allocation2 + $0x88] sm:$0xff] %v438
      %529 = vst [vmem:[#allocation2 + $0x90] sm:$0xff] %v443
      %530 = vst [vmem:[#allocation2 + $0x98] sm:$0xff] %v448
      %531 = vst [vmem:[#allocation2 + $0xa0] sm:$0xff] %v453
      %532 = vst [vmem:[#allocation2 + $0xa8] sm:$0xff] %v458
      %533 = vst [vmem:[#allocation2 + $0xb0] sm:$0xff] %v463
      %534 = vst [vmem:[#allocation2 + $0xb8] sm:$0xff] %v468
      %535 = vst [vmem:[#allocation2 + $0xc0] sm:$0xff] %v473
      %536 = vst [vmem:[#allocation2 + $0xc8] sm:$0xff] %v478
      %537 = vst [vmem:[#allocation2 + $0xd0] sm:$0xff] %v483
      %538 = vst [vmem:[#allocation2 + $0xd8] sm:$0xff] %v488
      %539 = vst [vmem:[#allocation2 + $0xe0] sm:$0xff] %v493
      %540 = vst [vmem:[#allocation2 + $0xe8] sm:$0xff] %v498
      %541 = vst [vmem:[#allocation2 + $0xf0] sm:$0xff] %v503
      %542 = vst [vmem:[#allocation2 + $0xf8] sm:$0xff] %v508
    $region30: #{tpu_custom_call.1} parent=1 // loop_footer
      %s125 = sadd.s32 1, %s121
    $region31: #{tpu_custom_call.1} parent=1 // loop_footer_branch
      %120 = sbr.rel target = $region27
    $region32: #{tpu_custom_call.1} parent=1 // loop_exit
      _
    loop: start=0, step=1, limit=16
    $region33: #{tpu_custom_call.1} parent=1 // loop_pre_header
      _
    $region34: #{tpu_custom_call.1} parent=1 // loop_header
      %s544 = sphi 0, %s548
      %p545 = scmp.ge.s32.totalorder %s544, 16
    $region35: #{tpu_custom_call.1} parent=1 // loop_header_branch
      %547 = sbr.rel (%p545) target = $region39
    $region36: #{tpu_custom_call.1} parent=1 // loop_body
      %s549 = sld [smem:[#allocation9 + %s544]]
      %s550 = scalar_lea.vmem [#allocation2], %s549
      %v551 = vld [vmem:[%s550] sm:$0x1]
      %s552 = scalar_lea.vmem [#allocation10], %s544
      %553 = vst [vmem:[%s552] sm:$0x1] %v551
    $region37: #{tpu_custom_call.1} parent=1 // loop_footer
      %s548 = sadd.s32 1, %s544
    $region38: #{tpu_custom_call.1} parent=1 // loop_footer_branch
      %543 = sbr.rel target = $region34
    $region39: #{tpu_custom_call.1} parent=1 // loop_exit
      _
    // Predicated region
    $region40: #{tpu_custom_call.1} parent=1 // pred_check
      _
    $region41: #{tpu_custom_call.1} parent=1 // pred_check_branch
      %555 = sbr.rel (0) target = $region43
    $region42: #{tpu_custom_call.1} parent=1 // pred_region
      %s557 = ssub.s32 256, 256
      %558 = vsyncadd [#allocation5], %s557
      %s559 = sshll.u32 [#allocation10], 4
      %s560 = int_to_ptr.vmem [resolvable:$true] %s559
      %565 = dma.vmem_to_hbm [thread:$0]  %s560, 256, %s3, [#allocation5], 128, 128, 8
    $region43: #{tpu_custom_call.1} parent=1 // pred_fallthru
      _
    // Predicated region
    $region44: #{tpu_custom_call.1} parent=1 // pred_check
      _
    $region45: #{tpu_custom_call.1} parent=1 // pred_check_branch
      %567 = sbr.rel (0) target = $region47
    $region46: #{tpu_custom_call.1} parent=1 // pred_region
      %568 = dma.done [#allocation5], 256
    $region47: #{tpu_custom_call.1} parent=1 // pred_fallthru
      _
    %569 = vsyncpa [#allocation4], 1
    %570 = vsyncpa [#allocation8], 1
    %571 = vsyncpa [#allocation5], 1
    %572 = vsyncpa [#allocation6], 1

</llo_original>
